<compile_context>
chip_gen: v5e
topology: v5e:2x2
jax: 0.10.0
libtpu: 0.0.40
codegen_flags: <defaults>
</compile_context>

<pallas_src>
import jax
import jax.numpy as jnp
from jax.experimental import pallas as pl
from jax.experimental.pallas import tpu as pltpu


def _round_up(x, m):
    return (x + m - 1) // m * m


def _default_row_tile():
    """Row-tile cap per device generation."""
    try:
        kind = jax.devices()[0].device_kind.lower()
    except Exception:
        return 256
    # v5e ("v5 lite"): 4x(128x128) MXU + lowest HBM BW -> 128-row tiles.
    # Match "v5e"/"v5 lite" only so v5p is NOT misclassified as v5e.
    if "v5e" in kind or "v5 lite" in kind or "v5lite" in kind:
        return 128
    # v6e: 128 MiB VMEM + 2x(256x256) MXU -> larger tiles amortize step overhead.
    if "v6" in kind:
        return 512
    # v5p / v7x (v7x: 64 MiB VMEM, 32 MiB scoped -> keep footprint modest).
    return 256


def _choose_tiling(B, n_patches, tm_cap, target_rows, min_steps):
    """Pick (patch rows per step tm_eff, images per step tb)."""
    if n_patches > tm_cap:
        tm_eff, tb = tm_cap, 1
    else:
        tm_eff = n_patches
        max_tb = max(1, min(B, target_rows // max(n_patches, 1)))
        # Largest divisor of B (avoids ragged batch tiles / wasted masked work).
        tb = max(d for d in range(1, max_tb + 1) if B % d == 0)

    def steps(tm_e, tb_):
        return pl.cdiv(n_patches, tm_e) * pl.cdiv(B, tb_)

    # Ensure enough grid steps for megacore sharding (v7x: 2 TCs) and for the
    # software pipeline to have something to overlap with.
    while tb > 1 and steps(tm_eff, tb) < min_steps:
        tb = max(d for d in range(1, tb) if B % d == 0)
    if steps(tm_eff, tb) < min_steps and tm_eff > 8:
        want_row_tiles = pl.cdiv(min_steps, pl.cdiv(B, tb))
        tm_eff = max(8, _round_up(pl.cdiv(n_patches, want_row_tiles), 8))
    return tm_eff, tb


def _embed_kernel(patches_ref, w_ref, pos_ref, out_ref):
    # patches_ref: (TB, TM, K)  bf16 -- TB images x TM patch rows
    # w_ref:       (K, H)       bf16 -- resident (constant index_map)
    # pos_ref:     (TM, H)      bf16 -- position embedding + folded conv bias
    # out_ref:     (TB, TM, H)
    w = w_ref[...]
    pos = pos_ref[...].astype(jnp.float32)
    for t in range(out_ref.shape[0]):          # static unroll over the batch tile
        acc = jnp.dot(patches_ref[t], w, preferred_element_type=jnp.float32)
        out_ref[t] = (acc + pos).astype(out_ref.dtype)


def embeddings_forward(x, conv_w, conv_b, pos_emb, patch_size, *,
                       out_dtype=None, tm=None, target_rows=512, min_steps=4):
    """x: (B, C, H, W) NCHW.  conv_w: (hidden, C, ph, pw). conv_b: (hidden,).
    pos_emb: (1, n_patches, hidden).
    Returns (embeddings, features, retain_size_2, retain_size_3) like the module."""
    B, C, H, W = x.shape
    ph, pw = patch_size
    hidden = conv_w.shape[0]
    gh, gw = H // ph, W // pw          # conv output spatial size
    n_patches = gh * gw
    K = C * ph * pw
    if out_dtype is None:
        out_dtype = x.dtype

    tm_cap = _default_row_tile() if tm is None else _round_up(max(tm, 8), 8)
    tm_eff, tb = _choose_tiling(B, n_patches, tm_cap, target_rows, min_steps)
    n_row_tiles = pl.cdiv(n_patches, tm_eff)
    n_batch_tiles = pl.cdiv(B, tb)

    # Patchify: non-overlapping patches flattened in (C, ph, pw) order to match
    # the PyTorch Conv2d weight layout (hidden, C, ph, pw).  allow_input_fusion
    # below lets XLA fuse this producer into the pallas_call input stream
    # instead of materializing the (B, n_patches, K) copy in HBM.
    patches = x.reshape(B, C, gh, ph, gw, pw)
    patches = patches.transpose(0, 2, 4, 1, 3, 5).reshape(B, n_patches, K)
    patches = patches.astype(jnp.bfloat16)              # bf16 in, f32 accumulate

    w_flat = conv_w.reshape(hidden, K).T.astype(jnp.bfloat16)     # (K, hidden)
    # Conv bias folded into the position embedding (both added post-matmul);
    # bf16 is enough for a learned additive term and halves its traffic/VMEM.
    pos = (pos_emb.reshape(n_patches, hidden)
           + conv_b.reshape(1, hidden)).astype(jnp.bfloat16)

    out = pl.pallas_call(
        _embed_kernel,
        out_shape=jax.ShapeDtypeStruct((B, n_patches, hidden), out_dtype),
        grid_spec=pltpu.PrefetchScalarGridSpec(
            num_scalar_prefetch=0,
            # Row-tile axis OUTER, batch axis INNER: w (constant index) and pos
            # (row-index only) stay resident across the inner batch loop.
            grid=(n_row_tiles, n_batch_tiles),
            in_specs=[
                pl.BlockSpec((tb, tm_eff, K), lambda i, b: (b, i, 0)),
                pl.BlockSpec((K, hidden), lambda i, b: (0, 0)),
                pl.BlockSpec((tm_eff, hidden), lambda i, b: (i, 0)),
            ],
            out_specs=pl.BlockSpec((tb, tm_eff, hidden), lambda i, b: (b, i, 0)),
        ),
        compiler_params=pltpu.CompilerParams(
            dimension_semantics=("parallel", "parallel"),
            allow_input_fusion=[True, False, False],
        ),
    )(patches, w_flat, pos)

    # TODO(synk): training-mode Dropout (pltpu.prng_*), the pretrain
    # contrastive/CLS-token branch, and the hybrid ResNetV2 backbone are not
    # implemented; this is the non-hybrid / non-pretrain / eval forward.
    features = None
    retain_size_2 = gh
    retain_size_3 = gw
    return out, features, retain_size_2, retain_size_3


if __name__ == "__main__":
    # Small, module-consistent shapes: batch=2, in_channels=3, img=16x16,
    # patch=4x4 -> n_patches=16, hidden=32.
    B, C, H, W = 2, 3, 16, 16
    patch_size = (4, 4)
    hidden = 32
    gh, gw = H // patch_size[0], W // patch_size[1]
    n_patches = gh * gw

    key = jax.random.PRNGKey(0)
    kx, kw, kb, kp = jax.random.split(key, 4)
    x = jax.random.normal(kx, (B, C, H, W), dtype=jnp.float32)
    conv_w = jax.random.normal(kw, (hidden, C, patch_size[0], patch_size[1]),
                               dtype=jnp.float32) * 0.02
    conv_b = jax.random.normal(kb, (hidden,), dtype=jnp.float32) * 0.02
    # Module initializes position_embeddings to zeros; use a deterministic
    # random init here so the add path is exercised.
    pos_emb = jax.random.normal(kp, (1, n_patches, hidden), dtype=jnp.float32) * 0.02

    # (a) default: min_steps=4 exercises the split-row, per-image grid path.
    emb_a, feats, rs2, rs3 = embeddings_forward(x, conv_w, conv_b, pos_emb, patch_size)
    # (b) min_steps=1 lets the batch-tiler merge both images into one step (TB=2).
    emb_b, _, _, _ = embeddings_forward(x, conv_w, conv_b, pos_emb, patch_size,
                                        min_steps=1)
    # (c) bf16 output (downstream transformer in bf16) halves the output stream.
    emb_c, _, _, _ = embeddings_forward(x, conv_w, conv_b, pos_emb, patch_size,
                                        out_dtype=jnp.bfloat16)
    emb_a, emb_b, emb_c = jax.block_until_ready((emb_a, emb_b, emb_c))

    # Pure-JAX references.
    ref_patches = x.reshape(B, C, gh, patch_size[0], gw, patch_size[1])
    ref_patches = ref_patches.transpose(0, 2, 4, 1, 3, 5).reshape(B, n_patches, -1)
    w_kh = conv_w.reshape(hidden, -1).T                       # (K, hidden)
    pos_bf = (pos_emb.reshape(n_patches, hidden) + conv_b[None, :]
              ).astype(jnp.bfloat16).astype(jnp.float32)
    # bf16-input / f32-accumulate reference (matches the kernel's MXU path).
    ref_bf = jnp.einsum(
        "bpk,kh->bph",
        ref_patches.astype(jnp.bfloat16).astype(jnp.float32),
        w_kh.astype(jnp.bfloat16).astype(jnp.float32),
        precision=jax.lax.Precision.HIGHEST,
    ) + pos_bf[None]
    # Full-precision module reference (semantic sanity).
    ref_f32 = jnp.einsum("bpk,kh->bph", ref_patches, w_kh,
                         precision=jax.lax.Precision.HIGHEST) \
        + conv_b[None, None, :] + pos_emb

    assert emb_a.shape == (B, n_patches, hidden) and emb_a.dtype == x.dtype
    assert emb_c.dtype == jnp.bfloat16
    assert rs2 == gh and rs3 == gw and feats is None
    assert jnp.allclose(emb_a, ref_bf, atol=1e-3, rtol=1e-3)
    assert jnp.allclose(emb_b, ref_bf, atol=1e-3, rtol=1e-3)
    assert jnp.allclose(emb_c.astype(jnp.float32), ref_bf, atol=1e-2, rtol=1e-2)
    assert jnp.allclose(emb_a, ref_f32, atol=2e-2, rtol=2e-2)

    print("KERNEL_OK")
</pallas_src>

<mosaic_0001>
module attributes {stable_mosaic.version = 11 : i64} {
  func.func @_embed_kernel(%arg0: i32, %arg1: i32, %arg2: memref<1x8x48xbf16, #tpu.memory_space<vmem>>, %arg3: memref<48x32xbf16, #tpu.memory_space<vmem>>, %arg4: memref<8x32xbf16, #tpu.memory_space<vmem>>, %arg5: memref<1x8x32xf32, #tpu.memory_space<vmem>>) attributes {dimension_semantics = [#tpu.dimension_semantics<parallel>, #tpu.dimension_semantics<parallel>], iteration_bounds = array<i64: 2, 2>, scalar_prefetch = 0 : i64, scratch_operands = 0 : i64, tpu.core_type = #tpu.core_type<tc>, window_params = [{transform_indices = @transform_0, window_bounds = array<i64: 1, 8, 48>}, {pipeline_mode = #tpu.pipeline_mode<synchronous>, transform_indices = @transform_1, window_bounds = array<i64: 48, 32>}, {transform_indices = @transform_2, window_bounds = array<i64: 8, 32>}, {transform_indices = @transform_3, window_bounds = array<i64: 1, 8, 32>}]} {
    %c0 = arith.constant 0 : index
    %c0_0 = arith.constant 0 : index
    %0 = vector.load %arg3[%c0, %c0_0] : memref<48x32xbf16, #tpu.memory_space<vmem>>, vector<48x32xbf16>
    %c0_1 = arith.constant 0 : index
    %c0_2 = arith.constant 0 : index
    %1 = vector.load %arg4[%c0_1, %c0_2] : memref<8x32xbf16, #tpu.memory_space<vmem>>, vector<8x32xbf16>
    %2 = arith.extf %1 : vector<8x32xbf16> to vector<8x32xf32>
    %c0_3 = arith.constant 0 : index
    %c0_4 = arith.constant 0 : index
    %c0_5 = arith.constant 0 : index
    %3 = vector.load %arg2[%c0_3, %c0_4, %c0_5] : memref<1x8x48xbf16, #tpu.memory_space<vmem>>, vector<1x8x48xbf16>
    %4 = vector.shape_cast %3 : vector<1x8x48xbf16> to vector<8x48xbf16>
    %cst = arith.constant dense<0.000000e+00> : vector<8x32xf32>
    %5 = tpu.matmul %4, %0, %cst {dimension_numbers = #tpu.dot_dimension_numbers<[1], [0], [0], [1], [0, 0, 1, 1], [], []>} : vector<8x48xbf16>, vector<48x32xbf16>, vector<8x32xf32> -> vector<8x32xf32>
    %6 = arith.addf %5, %2 : vector<8x32xf32>
    %c0_6 = arith.constant 0 : index
    %c0_7 = arith.constant 0 : index
    %c0_8 = arith.constant 0 : index
    %7 = vector.load %arg5[%c0_6, %c0_7, %c0_8] : memref<1x8x32xf32, #tpu.memory_space<vmem>>, vector<1x8x32xf32>
    %8 = vector.shape_cast %7 : vector<1x8x32xf32> to vector<8x32xf32>
    %9 = vector.shape_cast %6 : vector<8x32xf32> to vector<1x8x32xf32>
    tpu.vector_store %arg5[%c0_6, %c0_7, %c0_8], %9 {strides = array<i32>} : memref<1x8x32xf32, #tpu.memory_space<vmem>>, vector<1x8x32xf32>,
    return
  }
  func.func @transform_0(%arg0: i32, %arg1: i32) -> (i32, i32, i32) {
    %c0_i32 = arith.constant 0 : i32
    %c0_i32_0 = arith.constant 0 : i32
    return %arg1, %arg0, %c0_i32 : i32, i32, i32
  }
  func.func @transform_1(%arg0: i32, %arg1: i32) -> (i32, i32) {
    %c0_i32 = arith.constant 0 : i32
    %c0_i32_0 = arith.constant 0 : i32
    %c0_i32_1 = arith.constant 0 : i32
    return %c0_i32, %c0_i32_0 : i32, i32
  }
  func.func @transform_2(%arg0: i32, %arg1: i32) -> (i32, i32) {
    %c0_i32 = arith.constant 0 : i32
    %c0_i32_0 = arith.constant 0 : i32
    return %arg0, %c0_i32 : i32, i32
  }
  func.func @transform_3(%arg0: i32, %arg1: i32) -> (i32, i32, i32) {
    %c0_i32 = arith.constant 0 : i32
    %c0_i32_0 = arith.constant 0 : i32
    return %arg1, %arg0, %c0_i32 : i32, i32, i32
  }
}

</mosaic_0001>

<llo_original>
// kernel: tpu_custom_call.1
$region0: #{tpu_custom_call.1}
  #allocation0 [shape = 'u32[]', space=smem, size = 0x4, offset = 0x4, fixed_abs, tag = 'smem constant byte address 0x4 - core index']
  #allocation1 [shape = 'u32[72,128]{1,0:T(1,128)}', space=vmem, size = 0x9000, scoped, tag = 'internal scratch']
  %s0 = inlined_call_operand.vmem [shape: bf16[2,16,48], index: 0, kind: input, shape index: {}]
  %s1 = inlined_call_operand.vmem [shape: bf16[48,32], index: 1, kind: input, shape index: {}]
  %s2 = inlined_call_operand.vmem [shape: bf16[16,32], index: 2, kind: input, shape index: {}]
  %s3 = inlined_call_operand.hbm [shape: f32[2,16,32], index: 3, kind: output, shape index: {}]
  %s4 = sld [smem:[#allocation0]]
  $region45: #{tpu_custom_call.1} parent=0
    _
  %s6 = ssub.s32 1, %s4
  %s7 = scalar_select 0, %s6, %s4
  $region1: #{tpu_custom_call.1} parent=0
    #allocation2 [shape = 'u8[8192]{0}', space=vmem, size = 0x2000, scoped, tag = 'output window, operand 0']
    #allocation3 [shape = 's32[2]{0}', space=sflag, size = 0x8, scoped, tag = 'scoped memory for tpu_custom_call.1']
    %8 = vsyncpa [#allocation3], 0
    %s9 = scalar_lea.sflag [#allocation3], 1
    %10 = vsyncpa %s9, 0
    loop: start=0, step=1, limit=6
    $region2: #{tpu_custom_call.1} parent=1 // loop_pre_header
      _
    $region3: #{tpu_custom_call.1} parent=1 // loop_header
      %s12 = sphi 0, %s16
      %p13 = scmp.ge.s32.totalorder %s12, 6
      %s19 = sphi 0, %s31
      %s20 = sphi 0, %s27
      %s21 = sphi 0, %s19
      %s22 = sphi 0, %s20
      %s23 = sphi 0, %s21
      %s24 = sphi 0, %s22
      %s36 = sphi 0, %s38
      %s39 = sphi 0, %s36
      %s40 = sphi 0, %s39
      %s56 = sphi 0, %s40
      %s60 = sphi 0, %s60
      %s62 = sphi 0, %s60
      %s63 = sphi 0, %s62
      %s77 = sphi 0, %s63
      %s83 = sphi 0, %s85
      %s86 = sphi 0, %s83
      %s87 = sphi 0, %s86
      %s103 = sphi 0, %s87
      %s111 = sphi 0, %s113
      %s114 = sphi 0, %s111
      %s115 = sphi 0, %s114
      %s131 = sphi 0, %s115
    $region4: #{tpu_custom_call.1} parent=1 // loop_header_branch
      %15 = sbr.rel (%p13) target = $region8
    $region5: #{tpu_custom_call.1} parent=1 // loop_body
      %s17 = ssub.s32 %s12, 1
      %s18 = ssub.s32 %s12, 2
      %s25 = sadd.s32 1, %s20
      %p26 = scmp.ge.s32.totalorder %s25, 2
      %s27 = scalar_select %p26, 0, %s25
      %s28 = sadd.s32 1, %s19
      %s29 = scalar_select %p26, %s28, %s19
      %p30 = scmp.ge.s32.totalorder %s29, 2
      %s31 = scalar_select %p30, 0, %s29
      %s32 = ssub.s32 %s20, %s27
      %s33 = ssub.s32 %s19, %s31
      %s34 = sor.u32 %s32, %s33
      %p35 = scmp.eq.s32.totalorder %s34, 0
      %s37 = sadd.s32 %s36, 1
      %s38 = scalar_select %p35, %s36, %s37
      %p41 = pneg %p35
      %p42 = scmp.eq.s32.totalorder %s12, 3
      %p43 = por %p41, %p42
      %p44 = scmp.ne.s32.totalorder %s36, %s39
      %p45 = scmp.eq.s32.totalorder %s12, 0
      %p46 = por %p44, %p45
      %p47 = scmp.ne.s32.totalorder %s36, %s39
      %p48 = scmp.eq.s32.totalorder %s17, 3
      %p49 = por %p47, %p48
      %p50 = scmp.ne.s32.totalorder %s39, %s40
      %p51 = scmp.eq.s32.totalorder %s17, 0
      %p52 = por %p50, %p51
      %p53 = scmp.ne.s32.totalorder %s39, %s40
      %p54 = scmp.eq.s32.totalorder %s18, 3
      %p55 = por %p53, %p54
      %p57 = scmp.ne.s32.totalorder %s40, %s56
      %p58 = scmp.eq.s32.totalorder %s18, 0
      %p59 = por %p57, %p58
      %s61 = sadd.s32 %s60, 1
      %p64 = scmp.eq.s32.totalorder %s12, 3
      %p65 = scmp.ne.s32.totalorder %s60, %s62
      %p66 = scmp.eq.s32.totalorder %s12, 0
      %p67 = por %p65, %p66
      %p68 = scmp.ne.s32.totalorder %s60, %s62
      %p69 = scmp.eq.s32.totalorder %s17, 3
      %p70 = por %p68, %p69
      %p71 = scmp.ne.s32.totalorder %s62, %s63
      %p72 = scmp.eq.s32.totalorder %s17, 0
      %p73 = por %p71, %p72
      %p74 = scmp.ne.s32.totalorder %s62, %s63
      %p75 = scmp.eq.s32.totalorder %s18, 3
      %p76 = por %p74, %p75
      %p78 = scmp.ne.s32.totalorder %s63, %s77
      %p79 = scmp.eq.s32.totalorder %s18, 0
      %p80 = por %p78, %p79
      %s81 = ssub.s32 %s19, %s31
      %p82 = scmp.eq.s32.totalorder %s81, 0
      %s84 = sadd.s32 %s83, 1
      %s85 = scalar_select %p82, %s83, %s84
      %p88 = pneg %p82
      %p89 = scmp.eq.s32.totalorder %s12, 3
      %p90 = por %p88, %p89
      %p91 = scmp.ne.s32.totalorder %s83, %s86
      %p92 = scmp.eq.s32.totalorder %s12, 0
      %p93 = por %p91, %p92
      %p94 = scmp.ne.s32.totalorder %s83, %s86
      %p95 = scmp.eq.s32.totalorder %s17, 3
      %p96 = por %p94, %p95
      %p97 = scmp.ne.s32.totalorder %s86, %s87
      %p98 = scmp.eq.s32.totalorder %s17, 0
      %p99 = por %p97, %p98
      %p100 = scmp.ne.s32.totalorder %s86, %s87
      %p101 = scmp.eq.s32.totalorder %s18, 3
      %p102 = por %p100, %p101
      %p104 = scmp.ne.s32.totalorder %s87, %s103
      %p105 = scmp.eq.s32.totalorder %s18, 0
      %p106 = por %p104, %p105
      %s107 = ssub.s32 %s20, %s27
      %s108 = ssub.s32 %s19, %s31
      %s109 = sor.u32 %s107, %s108
      %p110 = scmp.eq.s32.totalorder %s109, 0
      %s112 = sadd.s32 %s111, 1
      %s113 = scalar_select %p110, %s111, %s112
      %p116 = pneg %p110
      %p117 = scmp.eq.s32.totalorder %s12, 3
      %p118 = por %p116, %p117
      %p119 = scmp.ne.s32.totalorder %s111, %s114
      %p120 = scmp.eq.s32.totalorder %s12, 0
      %p121 = por %p119, %p120
      %p122 = scmp.ne.s32.totalorder %s111, %s114
      %p123 = scmp.eq.s32.totalorder %s17, 3
      %p124 = por %p122, %p123
      %p125 = scmp.ne.s32.totalorder %s114, %s115
      %p126 = scmp.eq.s32.totalorder %s17, 0
      %p127 = por %p125, %p126
      %p128 = scmp.ne.s32.totalorder %s114, %s115
      %p129 = scmp.eq.s32.totalorder %s18, 3
      %p130 = por %p128, %p129
      %p132 = scmp.ne.s32.totalorder %s115, %s131
      %p133 = scmp.eq.s32.totalorder %s18, 0
      %p134 = por %p132, %p133
      %p135 = scmp.le.s32.totalorder 1, %s12
      %p136 = scmp.lt.s32.totalorder %s12, 5
      %p137 = pnand %p135, %p136
      %p138 = pneg %p137
      // Predicated region
      $region9: #{tpu_custom_call.1} parent=5 // pred_check
        _
      $region10: #{tpu_custom_call.1} parent=5 // pred_check_branch
        %140 = sbr.rel (%p137) target = $region12
      $region11: #{tpu_custom_call.1} parent=5 // pred_region
        %s141 = ssub.s32 %s12, 1
        // Predicated region
        $region13: #{tpu_custom_call.1} parent=11 // pred_check
          %p142 = pneg %p73
        $region14: #{tpu_custom_call.1} parent=11 // pred_check_branch
          %144 = sbr.rel (%p142) target = $region16
        $region15: #{tpu_custom_call.1} parent=11 // pred_region
          _
        $region16: #{tpu_custom_call.1} parent=11 // pred_fallthru
          _
      $region12: #{tpu_custom_call.1} parent=5 // pred_fallthru
        _
      %p145 = scmp.lt.s32.totalorder %s12, 4
      // Predicated region
      $region17: #{tpu_custom_call.1} parent=5 // pred_check
        %p146 = pneg %p145
      $region18: #{tpu_custom_call.1} parent=5 // pred_check_branch
        %148 = sbr.rel (%p146) target = $region20
      $region19: #{tpu_custom_call.1} parent=5 // pred_region
        // Predicated region
        $region21: #{tpu_custom_call.1} parent=19 // pred_check
          %p149 = pneg %p46
        $region22: #{tpu_custom_call.1} parent=19 // pred_check_branch
          %151 = sbr.rel (%p149) target = $region24
        $region23: #{tpu_custom_call.1} parent=19 // pred_region
          %p152 = scmp.lt.s32.totalorder %s20, 1
          %s153 = scalar_select %p152, %s20, 1
          %p154 = scmp.lt.s32.totalorder %s19, 1
          %s155 = scalar_select %p154, %s19, 1
          %s156 = smul.addr %s153, 2
          %s157 = sadd.s32 %s155, %s156
          %s158 = smul.addr %s157, 4
          %s159 = scalar_lea.vmem %s0, %s158
        $region24: #{tpu_custom_call.1} parent=19 // pred_fallthru
          _
        // Predicated region
        $region25: #{tpu_custom_call.1} parent=19 // pred_check
          %p160 = pneg %p93
        $region26: #{tpu_custom_call.1} parent=19 // pred_check_branch
          %162 = sbr.rel (%p160) target = $region28
        $region27: #{tpu_custom_call.1} parent=19 // pred_region
          %p163 = scmp.lt.s32.totalorder %s19, 1
          %s164 = scalar_select %p163, %s19, 1
          %s165 = smul.addr %s164, 4
          %s166 = scalar_lea.vmem %s2, %s165
        $region28: #{tpu_custom_call.1} parent=19 // pred_fallthru
          _
      $region20: #{tpu_custom_call.1} parent=5 // pred_fallthru
        _
      %p167 = scmp.le.s32.totalorder 1, %s12
      %p168 = scmp.lt.s32.totalorder %s12, 5
      %p169 = pnand %p167, %p168
      %p170 = pneg %p169
      // Predicated region
      $region29: #{tpu_custom_call.1} parent=5 // pred_check
        _
      $region30: #{tpu_custom_call.1} parent=5 // pred_check_branch
        %172 = sbr.rel (%p169) target = $region32
      $region31: #{tpu_custom_call.1} parent=5 // pred_region
        %s173 = ssub.s32 %s12, 1
        %p174 = scmp.lt.s32.totalorder %s22, 1
        %s175 = scalar_select %p174, %s22, 1
        %p176 = scmp.lt.s32.totalorder %s21, 1
        %s177 = scalar_select %p176, %s21, 1
        %s178 = smul.addr %s175, 2
        %s179 = sadd.s32 %s177, %s178
        %s180 = smul.addr %s179, 4
        %s181 = scalar_lea.vmem %s0, %s180
        %p182 = pneg %p52
        %p183 = pneg %p49
        %p184 = pneg %p73
        %p185 = pneg %p70
        %p186 = scmp.lt.s32.totalorder %s21, 1
        %s187 = scalar_select %p186, %s21, 1
        %s188 = smul.addr %s187, 4
        %s189 = scalar_lea.vmem %s2, %s188
        %p190 = pneg %p99
        %p191 = pneg %p96
        %p192 = pneg %p127
        %p193 = pneg %p124
        %s194 = sand.u32 %s114, 1
        %s195 = scalar_lea.sflag [#allocation3], %s194
        %s196 = sand.u32 %s114, 1
        %s197 = smul.addr %s196, 8
        %s198 = scalar_lea.vmem [#allocation2], %s197
        %p199 = scmp.lt.s32.totalorder %s22, 1
        %s200 = scalar_select %p199, %s22, 1
        %p201 = scmp.lt.s32.totalorder %s21, 1
        %s202 = scalar_select %p201, %s21, 1
        %s203 = smul.addr %s200, 2
        %s204 = sadd.s32 %s202, %s203
        %s205 = smul.addr %s204, 4
        %s206 = scalar_lea.vmem %s0, %s205
        %p207 = scmp.lt.s32.totalorder %s21, 1
        %s208 = scalar_select %p207, %s21, 1
        %s209 = smul.addr %s208, 4
        %s210 = scalar_lea.vmem %s2, %s209
        %v212 = vld [vmem:[%s1] sm:$0xf]
        %v213 = vld [vmem:[%s1 + $0x4] sm:$0xf]
        %v214 = vld [vmem:[%s1 + $0x8] sm:$0xf]
        %v215 = vld [vmem:[%s1 + $0xc] sm:$0xf]
        %v216 = vld [vmem:[%s1 + $0x10] sm:$0xf]
        %v217 = vld [vmem:[%s1 + $0x14] sm:$0xf]
        %v218 = vld [vmem:[%s210] sm:$0xf]
        %v219 = vunpack.c.l.bf16 %v218
        %v220 = vld [vmem:[%s206] sm:$0xf]
        %v227 = vunpack.c.l.b16 %v212
        %v228 = vunpack.c.l.b16 %v213
        %v229 = vunpack.c.l.b16 %v214
        %v230 = vunpack.c.l.b16 %v215
        %v231 = vunpack.c.l.b16 %v216
        %v232 = vunpack.c.l.b16 %v217
        %v233 = vpack.c.b16 %v228, %v227
        %v234 = vpack.c.b16 %v230, %v229
        %v235 = vpack.c.b16 %v232, %v231
        %vm239 = vcmask 392192
        %v241 = vsel %vm239, %v220, 0
        %243 = vmatpush.bf16.msra.mxu0 0
        %244 = vmatpush.bf16.msra.mxu0 0
        %245 = vmatpush.bf16.msra.mxu0 0
        %246 = vmatpush.bf16.msra.mxu0 0
        %247 = vmatpush.bf16.msra.mxu0 0
        %248 = vmatpush.bf16.msra.mxu0 %v235
        %249 = vmatpush.bf16.msra.mxu0 %v234
        %250 = vmatpush.bf16.msra.mxu0 %v233
        %251 = vmatmul.bf16.gmra.mxu0 %v241
        %v252 = vpop.f32.mrf.mxu0
        %v253 = vadd.f32 %v219, %v252
        %v254 = vpop.f32.mrf.mxu0
        %255 = vdwg.mxu0
        %vm256 = vcmask 261120
        %257 = vst.msk [vmem:[%s198] sm:$0xff] %vm256, %v253
        %s258 = sand.u32 %s114, 1
        %s259 = scalar_lea.sflag [#allocation3], %s258
        %s260 = sand.u32 %s114, 1
        %s261 = smul.addr %s260, 8
        %s262 = scalar_lea.vmem [#allocation2], %s261
        // Predicated region
        $region33: #{tpu_custom_call.1} parent=31 // pred_check
          %p263 = pneg %p124
        $region34: #{tpu_custom_call.1} parent=31 // pred_check_branch
          %265 = sbr.rel (%p263) target = $region36
        $region35: #{tpu_custom_call.1} parent=31 // pred_region
          %267 = vsyncadd %s259, 0
          %s268 = smul.addr %s22, 2
          %s269 = sadd.s32 %s21, %s268
          %s270 = smul.addr %s269, 8
          %s271 = scalar_lea.hbm %s3, %s270
          %s273 = sshll.u32 %s262, 4
          %s274 = int_to_ptr.vmem [resolvable:$true] %s273
          %s275 = sshll.u32 %s271, 4
          %s276 = int_to_ptr.hbm [resolvable:$true] %s275
          %278 = dma.vmem_to_hbm [thread:$0]  %s274, 128, %s276, %s259
        $region36: #{tpu_custom_call.1} parent=31 // pred_fallthru
          _
      $region32: #{tpu_custom_call.1} parent=5 // pred_fallthru
        _
      %p279 = scmp.le.s32.totalorder 2, %s12
      // Predicated region
      $region37: #{tpu_custom_call.1} parent=5 // pred_check
        %p280 = pneg %p279
      $region38: #{tpu_custom_call.1} parent=5 // pred_check_branch
        %282 = sbr.rel (%p280) target = $region40
      $region39: #{tpu_custom_call.1} parent=5 // pred_region
        %s283 = ssub.s32 %s12, 2
        // Predicated region
        $region41: #{tpu_custom_call.1} parent=39 // pred_check
          %p284 = pneg %p130
        $region42: #{tpu_custom_call.1} parent=39 // pred_check_branch
          %286 = sbr.rel (%p284) target = $region44
        $region43: #{tpu_custom_call.1} parent=39 // pred_region
          %s287 = sand.u32 %s115, 1
          %s288 = scalar_lea.sflag [#allocation3], %s287
          %s289 = sand.u32 %s115, 1
          %s290 = smul.addr %s289, 8
          %s291 = scalar_lea.vmem [#allocation2], %s290
          %293 = dma.done %s288, 128
        $region44: #{tpu_custom_call.1} parent=39 // pred_fallthru
          _
      $region40: #{tpu_custom_call.1} parent=5 // pred_fallthru
        _
    $region6: #{tpu_custom_call.1} parent=1 // loop_footer
      %s16 = sadd.s32 1, %s12
    $region7: #{tpu_custom_call.1} parent=1 // loop_footer_branch
      %11 = sbr.rel target = $region3
    $region8: #{tpu_custom_call.1} parent=1 // loop_exit
      _
    %294 = vsyncpa [#allocation3], 1
    %s295 = scalar_lea.sflag [#allocation3], 1
    %296 = vsyncpa %s295, 1

</llo_original>
